<compile_context>
chip_gen: v7x
topology: tpu7x:2x2x1
jax: 0.10.0
libtpu: 0.0.40
codegen_flags: <defaults>
</compile_context>

<pallas_src>
import jax
import jax.numpy as jnp
from jax.experimental import pallas as pl
from jax.experimental.pallas import tpu as pltpu


def _round_up(v, m):
    return ((v + m - 1) // m) * m


# ---------------------------- fused kernel -------------------------------------


def _fused_head_kernel(x_ref, w1_ref, b1_ref, w2_ref, b2_ref, o_ref):
    """All heads fused: ReLU(x @ W1_cat + b1_cat) @ W2_cat(block-diag) + b2_cat."""
    x = x_ref[...]                                                      # (tile_n, D)
    h = jnp.dot(x, w1_ref[...], preferred_element_type=jnp.float32)    # (tile_n, H_total)
    h = jnp.maximum(h + b1_ref[...], 0.0)                              # bias + ReLU
    y = jnp.dot(h, w2_ref[...], preferred_element_type=jnp.float32)    # (tile_n, O8)
    o_ref[...] = (y + b2_ref[...]).astype(o_ref.dtype)                 # narrow output store


def _pick_tiling(n, tile_n):
    """Balanced node tiling: big tiles, >=2 tiles once n exceeds tile_n."""
    n8 = _round_up(n, 8)
    if n8 <= tile_n:
        return n8, 1                       # single tile (small problems)
    num_tiles = pl.cdiv(n8, tile_n)        # >= 2 -> both v7x TCs get work
    tile = _round_up(pl.cdiv(n8, num_tiles), 8)
    return tile, num_tiles


def fused_heads(x, w1_cat, b1_cat, w2_cat, b2_cat, *, tile_n=2048):
    """Run the fused 2-layer MLP heads over all nodes.

    x      : (N, D)
    w1_cat : (D, H_total)   b1_cat : (1, H_total)
    w2_cat : (H_total, O8)  b2_cat : (1, O8)
    returns (N, O8)
    """
    N, D = x.shape
    H_total = w1_cat.shape[1]
    O8 = w2_cat.shape[1]

    tile_n, num_tiles = _pick_tiling(N, tile_n)
    n_pad = tile_n * num_tiles
    if n_pad != N:
        # Zero-pad so every grid step computes on fully defined rows; padded
        # output rows are sliced off below.
        x = jnp.pad(x, ((0, n_pad - N), (0, 0)))

    flops = 2 * n_pad * H_total * (D + O8)
    bytes_accessed = 4 * (n_pad * (D + O8)
                          + D * H_total + H_total + H_total * O8 + O8)

    out = pl.pallas_call(
        _fused_head_kernel,
        out_shape=jax.ShapeDtypeStruct((n_pad, O8), x.dtype),
        grid_spec=pl.GridSpec(
            grid=(num_tiles,),
            in_specs=[
                pl.BlockSpec((tile_n, D), lambda n: (n, 0)),
                # weights/biases: full blocks, resident across all node tiles
                pl.BlockSpec((D, H_total), lambda n: (0, 0)),
                pl.BlockSpec((1, H_total), lambda n: (0, 0)),
                pl.BlockSpec((H_total, O8), lambda n: (0, 0)),
                pl.BlockSpec((1, O8), lambda n: (0, 0)),
            ],
            out_specs=pl.BlockSpec((tile_n, O8), lambda n: (n, 0)),
        ),
        compiler_params=pltpu.CompilerParams(
            dimension_semantics=("parallel",)),  # node tiles shard across TCs (v7x)
        cost_estimate=pl.CostEstimate(
            flops=flops, transcendentals=0, bytes_accessed=bytes_accessed),
    )(x, w1_cat, b1_cat, w2_cat, b2_cat)
    return out[:N]


# ---------------- parameter construction (deterministic, synthetic) ------------


def _init_linear(key, fan_in, fan_out):
    """PyTorch nn.Linear default init: U(-1/sqrt(fan_in), 1/sqrt(fan_in))."""
    kw, kb = jax.random.split(key)
    bound = 1.0 / (fan_in ** 0.5)
    w = jax.random.uniform(kw, (fan_in, fan_out), jnp.float32, -bound, bound)
    b = jax.random.uniform(kb, (fan_out,), jnp.float32, -bound, bound)
    return w, b


def init_params(key, dim_in, dim_out, node_target_dim, dim_inner):
    keys = jax.random.split(key, 2 + 2 * node_target_dim)
    # main post-mp head: dim_in -> dim_inner -> dim_out
    w1, b1 = _init_linear(keys[0], dim_in, dim_inner)
    w2, b2 = _init_linear(keys[1], dim_inner, dim_out)
    post = dict(w1=w1, b1=b1, w2=w2, b2=b2)
    # self-head: T independent MLPs dim_in -> dim_inner -> 1
    s_w1, s_b1, s_w2, s_b2 = [], [], [], []
    for t in range(node_target_dim):
        a, b = _init_linear(keys[2 + 2 * t], dim_in, dim_inner)
        c, d = _init_linear(keys[3 + 2 * t], dim_inner, 1)
        s_w1.append(a); s_b1.append(b); s_w2.append(c); s_b2.append(d)
    self_head = dict(
        w1=jnp.stack(s_w1), b1=jnp.stack(s_b1),   # (T, D, H), (T, H)
        w2=jnp.stack(s_w2), b2=jnp.stack(s_b2),   # (T, H, 1), (T, 1)
    )
    return dict(post=post, self_head=self_head)


def fuse_params(params, dim_out):
    """Build the fused/concatenated weight layout consumed by the kernel.

    Fused hidden axis (H_total = (1+T)*H):
      [0:H]            -> main post-mp head hidden units
      [(1+t)H:(2+t)H]  -> self-head t hidden units
    Fused output axis (O8 = round_up(dim_out + T, 8)):
      [0:dim_out]            -> pred
      [dim_out:dim_out + T]  -> node_feature_pre columns
      rest                   -> zero padding (kept tiny: 8 lanes total)
    NOTE: for v6e/v7x inference speed, cast these (and x) to bfloat16 and keep
    f32 accumulation in the kernel; kept f32 here to preserve exact numerics.
    """
    post, sh = params["post"], params["self_head"]
    T, D, H = sh["w1"].shape
    H_total = (1 + T) * H
    O_total = dim_out + T
    O8 = max(8, _round_up(O_total, 8))

    # layer 1: simple concat along output features
    w1_cat = jnp.concatenate(
        [post["w1"]] + [sh["w1"][t] for t in range(T)], axis=1)        # (D, H_total)
    b1_cat = jnp.concatenate(
        [post["b1"]] + [sh["b1"][t] for t in range(T)], axis=0)[None]  # (1, H_total)

    # layer 2: block-diagonal placement into a NARROW (8-lane) output slab
    w2_cat = jnp.zeros((H_total, O8), jnp.float32)
    w2_cat = w2_cat.at[0:H, 0:dim_out].set(post["w2"])
    b2_cat = jnp.zeros((1, O8), jnp.float32)
    b2_cat = b2_cat.at[0, 0:dim_out].set(post["b2"])
    for t in range(T):
        w2_cat = w2_cat.at[(1 + t) * H:(2 + t) * H,
                           dim_out + t:dim_out + t + 1].set(sh["w2"][t])
        b2_cat = b2_cat.at[0, dim_out + t].set(sh["b2"][t, 0])

    return dict(w1=w1_cat, b1=b1_cat, w2=w2_cat, b2=b2_cat,
                dim_out=dim_out, node_target_dim=T)


# ---------------- forward (mirrors GNNInductiveNetSciNodeHead.forward) ---------


def gnn_inductive_netsci_node_head(fused, batch, *, tile_n=2048):
    x = batch["x"]                           # (N, dim_in)
    y = batch["y"]                           # labels, passed through unchanged
    node_measures = batch["node_measures"]   # (N, T)

    out = fused_heads(x, fused["w1"], fused["b1"], fused["w2"], fused["b2"],
                      tile_n=tile_n)
    dim_out = fused["dim_out"]
    T = fused["node_target_dim"]

    # layer_post_mp(batch) -> pred;  hstack of self-heads -> node_feature_pre
    pred = out[:, :dim_out]                              # (N, dim_out)
    node_feature_pre = out[:, dim_out:dim_out + T]       # (N, T)
    node_feature_true = node_measures
    label = y

    # TODO(synk): emb_visual branch is hard-coded False in the module (dead code); not implemented.
    return pred, label, node_feature_pre, node_feature_true


# ---------------- pure-JAX reference for a correctness check -------------------


def _ref_mlp2(x, w1, b1, w2, b2):
    h = jnp.maximum(x @ w1 + b1, 0.0)
    return h @ w2 + b2


def reference_forward(params, batch):
    x = batch["x"]
    sh = params["self_head"]
    cols = [_ref_mlp2(x, sh["w1"][t], sh["b1"][t], sh["w2"][t], sh["b2"][t])
            for t in range(sh["w1"].shape[0])]
    node_feature_pre = jnp.concatenate(cols, axis=1)
    ph = params["post"]
    pred = _ref_mlp2(x, ph["w1"], ph["b1"], ph["w2"], ph["b2"])
    return pred, batch["y"], node_feature_pre, batch["node_measures"]


if __name__ == "__main__":
    # Small shapes: N nodes, dim_in features, dim_out prediction classes,
    # T node-measure targets (cfg.share.node_measures_dim).
    DIM_IN, DIM_INNER, DIM_OUT, T = 32, 32, 4, 3

    key = jax.random.PRNGKey(0)
    k_par, k_x, k_y, k_nm, k_x2, k_y2, k_nm2 = jax.random.split(key, 7)

    params = init_params(k_par, DIM_IN, DIM_OUT, T, DIM_INNER)
    fused = fuse_params(params, DIM_OUT)

    def make_batch(kx, ky, knm, n):
        return {
            "x": jax.random.normal(kx, (n, DIM_IN), jnp.float32),
            "y": jax.random.randint(ky, (n,), 0, DIM_OUT, jnp.int32),
            "node_measures": jax.random.normal(knm, (n, T), jnp.float32),
        }

    def check(batch, n, tile_n):
        pred, label, nf_pre, nf_true = gnn_inductive_netsci_node_head(
            fused, batch, tile_n=tile_n)
        jax.block_until_ready((pred, label, nf_pre, nf_true))
        r_pred, r_label, r_pre, r_true = reference_forward(params, batch)
        assert pred.shape == (n, DIM_OUT) and nf_pre.shape == (n, T)
        assert jnp.allclose(pred, r_pred, atol=1e-5, rtol=1e-5)
        assert jnp.allclose(nf_pre, r_pre, atol=1e-5, rtol=1e-5)
        assert jnp.array_equal(label, r_label)
        assert jnp.array_equal(nf_true, r_true)

    # 1) small single-tile case
    N1 = 128
    check(make_batch(k_x, k_y, k_nm, N1), N1, tile_n=2048)

    # 2) multi-tile case with ragged N (exercises balanced tiling + zero padding)
    N2 = 601
    check(make_batch(k_x2, k_y2, k_nm2, N2), N2, tile_n=256)

    print("KERNEL_OK")
</pallas_src>

<mosaic_0001>
module attributes {stable_mosaic.version = 11 : i64} {
  func.func @_fused_head_kernel(%arg0: i32, %arg1: memref<128x32xf32, #tpu.memory_space<vmem>>, %arg2: memref<32x128xf32, #tpu.memory_space<vmem>>, %arg3: memref<1x128xf32, #tpu.memory_space<vmem>>, %arg4: memref<128x8xf32, #tpu.memory_space<vmem>>, %arg5: memref<1x8xf32, #tpu.memory_space<vmem>>, %arg6: memref<128x8xf32, #tpu.memory_space<vmem>>) attributes {dimension_semantics = [#tpu.dimension_semantics<parallel>], iteration_bounds = array<i64: 1>, scalar_prefetch = 0 : i64, scratch_operands = 0 : i64, tpu.core_type = #tpu.core_type<tc>, window_params = [{transform_indices = @transform_0, window_bounds = array<i64: 128, 32>}, {pipeline_mode = #tpu.pipeline_mode<synchronous>, transform_indices = @transform_1, window_bounds = array<i64: 32, 128>}, {pipeline_mode = #tpu.pipeline_mode<synchronous>, transform_indices = @transform_2, window_bounds = array<i64: 1, 128>}, {pipeline_mode = #tpu.pipeline_mode<synchronous>, transform_indices = @transform_3, window_bounds = array<i64: 128, 8>}, {pipeline_mode = #tpu.pipeline_mode<synchronous>, transform_indices = @transform_4, window_bounds = array<i64: 1, 8>}, {transform_indices = @transform_5, window_bounds = array<i64: 128, 8>}]} {
    %c0 = arith.constant 0 : index
    %c0_0 = arith.constant 0 : index
    %0 = vector.load %arg1[%c0, %c0_0] : memref<128x32xf32, #tpu.memory_space<vmem>>, vector<128x32xf32>
    %c0_1 = arith.constant 0 : index
    %c0_2 = arith.constant 0 : index
    %1 = vector.load %arg2[%c0_1, %c0_2] : memref<32x128xf32, #tpu.memory_space<vmem>>, vector<32x128xf32>
    %cst = arith.constant dense<0.000000e+00> : vector<128x128xf32>
    %2 = tpu.matmul %0, %1, %cst {dimension_numbers = #tpu.dot_dimension_numbers<[1], [0], [0], [1], [0, 0, 1, 1], [], []>} : vector<128x32xf32>, vector<32x128xf32>, vector<128x128xf32> -> vector<128x128xf32>
    %c0_3 = arith.constant 0 : index
    %c0_4 = arith.constant 0 : index
    %3 = vector.load %arg3[%c0_3, %c0_4] : memref<1x128xf32, #tpu.memory_space<vmem>>, vector<1x128xf32>
    %4 = vector.broadcast %3 : vector<1x128xf32> to vector<128x128xf32>
    %5 = arith.addf %2, %4 : vector<128x128xf32>
    %cst_5 = arith.constant 0.000000e+00 : f32
    %6 = vector.broadcast %cst_5 : f32 to vector<128x128xf32>
    %7 = arith.maximumf %5, %6 : vector<128x128xf32>
    %c0_6 = arith.constant 0 : index
    %c0_7 = arith.constant 0 : index
    %8 = vector.load %arg4[%c0_6, %c0_7] : memref<128x8xf32, #tpu.memory_space<vmem>>, vector<128x8xf32>
    %cst_8 = arith.constant dense<0.000000e+00> : vector<128x8xf32>
    %9 = tpu.matmul %7, %8, %cst_8 {dimension_numbers = #tpu.dot_dimension_numbers<[1], [0], [0], [1], [0, 0, 1, 1], [], []>} : vector<128x128xf32>, vector<128x8xf32>, vector<128x8xf32> -> vector<128x8xf32>
    %c0_9 = arith.constant 0 : index
    %c0_10 = arith.constant 0 : index
    %10 = vector.load %arg5[%c0_9, %c0_10] : memref<1x8xf32, #tpu.memory_space<vmem>>, vector<1x8xf32>
    %11 = vector.broadcast %10 : vector<1x8xf32> to vector<128x8xf32>
    %12 = arith.addf %9, %11 : vector<128x8xf32>
    %c0_11 = arith.constant 0 : index
    %c0_12 = arith.constant 0 : index
    %13 = vector.load %arg6[%c0_11, %c0_12] : memref<128x8xf32, #tpu.memory_space<vmem>>, vector<128x8xf32>
    tpu.vector_store %arg6[%c0_11, %c0_12], %12 {strides = array<i32>} : memref<128x8xf32, #tpu.memory_space<vmem>>, vector<128x8xf32>,
    return
  }
  func.func @transform_0(%arg0: i32) -> (i32, i32) {
    %c0_i32 = arith.constant 0 : i32
    %c0_i32_0 = arith.constant 0 : i32
    return %arg0, %c0_i32 : i32, i32
  }
  func.func @transform_1(%arg0: i32) -> (i32, i32) {
    %c0_i32 = arith.constant 0 : i32
    %c0_i32_0 = arith.constant 0 : i32
    %c0_i32_1 = arith.constant 0 : i32
    return %c0_i32, %c0_i32_0 : i32, i32
  }
  func.func @transform_2(%arg0: i32) -> (i32, i32) {
    %c0_i32 = arith.constant 0 : i32
    %c0_i32_0 = arith.constant 0 : i32
    %c0_i32_1 = arith.constant 0 : i32
    return %c0_i32, %c0_i32_0 : i32, i32
  }
  func.func @transform_3(%arg0: i32) -> (i32, i32) {
    %c0_i32 = arith.constant 0 : i32
    %c0_i32_0 = arith.constant 0 : i32
    %c0_i32_1 = arith.constant 0 : i32
    return %c0_i32, %c0_i32_0 : i32, i32
  }
  func.func @transform_4(%arg0: i32) -> (i32, i32) {
    %c0_i32 = arith.constant 0 : i32
    %c0_i32_0 = arith.constant 0 : i32
    %c0_i32_1 = arith.constant 0 : i32
    return %c0_i32, %c0_i32_0 : i32, i32
  }
  func.func @transform_5(%arg0: i32) -> (i32, i32) {
    %c0_i32 = arith.constant 0 : i32
    %c0_i32_0 = arith.constant 0 : i32
    return %arg0, %c0_i32 : i32, i32
  }
}

</mosaic_0001>

<llo_original>
// kernel: tpu_custom_call.1
$region0: #{tpu_custom_call.1}
  #allocation0 [shape = 'u32[]', space=smem, size = 0x4, offset = 0x4, fixed_abs, tag = 'smem constant byte address 0x4 - core index']
  #allocation1 [shape = 'u32[144,128]{1,0:T(1,128)}', space=vmem, size = 0x12000, scoped, tag = 'internal scratch']
  %s0 = inlined_call_operand.vmem [shape: f32[128,32], index: 0, kind: input, shape index: {}]
  %s1 = inlined_call_operand.vmem [shape: f32[32,128], index: 1, kind: input, shape index: {}]
  %s2 = inlined_call_operand.vmem [shape: f32[1,128], index: 2, kind: input, shape index: {}]
  %s3 = inlined_call_operand.vmem [shape: f32[128,8], index: 3, kind: input, shape index: {}]
  %s4 = inlined_call_operand.vmem [shape: f32[1,8], index: 4, kind: input, shape index: {}]
  %s5 = inlined_call_operand.vmem [shape: f32[128,8], index: 5, kind: output, shape index: {}]
  %s6 = sld [smem:[#allocation0]]
  $region30: #{tpu_custom_call.1} parent=0
    _
  %s8 = ssub.s32 1, %s6
  %s9 = scalar_select 0, %s8, %s6
  // Predicated region
  $region2: #{tpu_custom_call.1} parent=0 // pred_check
    _
  $region3: #{tpu_custom_call.1} parent=0 // pred_check_branch
    %11 = sbr.rel (0) target = $region5
  $region4: #{tpu_custom_call.1} parent=0 // pred_region
    _
  $region5: #{tpu_custom_call.1} parent=0 // pred_fallthru
    _
  // Predicated region
  $region6: #{tpu_custom_call.1} parent=0 // pred_check
    _
  $region7: #{tpu_custom_call.1} parent=0 // pred_check_branch
    %13 = sbr.rel (0) target = $region9
  $region8: #{tpu_custom_call.1} parent=0 // pred_region
    _
  $region9: #{tpu_custom_call.1} parent=0 // pred_fallthru
    _
  // Predicated region
  $region10: #{tpu_custom_call.1} parent=0 // pred_check
    _
  $region11: #{tpu_custom_call.1} parent=0 // pred_check_branch
    %15 = sbr.rel (0) target = $region13
  $region12: #{tpu_custom_call.1} parent=0 // pred_region
    _
  $region13: #{tpu_custom_call.1} parent=0 // pred_fallthru
    _
  // Predicated region
  $region14: #{tpu_custom_call.1} parent=0 // pred_check
    _
  $region15: #{tpu_custom_call.1} parent=0 // pred_check_branch
    %17 = sbr.rel (0) target = $region17
  $region16: #{tpu_custom_call.1} parent=0 // pred_region
    _
  $region17: #{tpu_custom_call.1} parent=0 // pred_fallthru
    _
  // Predicated region
  $region18: #{tpu_custom_call.1} parent=0 // pred_check
    _
  $region19: #{tpu_custom_call.1} parent=0 // pred_check_branch
    %19 = sbr.rel (0) target = $region21
  $region20: #{tpu_custom_call.1} parent=0 // pred_region
    _
  $region21: #{tpu_custom_call.1} parent=0 // pred_fallthru
    _
  %v20 = vld [vmem:[%s0] sm:$0xff]
  %v21 = vld [vmem:[%s0 + $0x8] sm:$0xff]
  %v22 = vld [vmem:[%s0 + $0x10] sm:$0xff]
  %v23 = vld [vmem:[%s0 + $0x18] sm:$0xff]
  %v24 = vld [vmem:[%s0 + $0x20] sm:$0xff]
  %v25 = vld [vmem:[%s0 + $0x28] sm:$0xff]
  %v26 = vld [vmem:[%s0 + $0x30] sm:$0xff]
  %v27 = vld [vmem:[%s0 + $0x38] sm:$0xff]
  %v28 = vld [vmem:[%s0 + $0x40] sm:$0xff]
  %v29 = vld [vmem:[%s0 + $0x48] sm:$0xff]
  %v30 = vld [vmem:[%s0 + $0x50] sm:$0xff]
  %v31 = vld [vmem:[%s0 + $0x58] sm:$0xff]
  %v32 = vld [vmem:[%s0 + $0x60] sm:$0xff]
  %v33 = vld [vmem:[%s0 + $0x68] sm:$0xff]
  %v34 = vld [vmem:[%s0 + $0x70] sm:$0xff]
  %v35 = vld [vmem:[%s0 + $0x78] sm:$0xff]
  %v36 = vld [vmem:[%s1] sm:$0xff]
  %v37 = vld [vmem:[%s1 + $0x8] sm:$0xff]
  %v38 = vld [vmem:[%s1 + $0x10] sm:$0xff]
  %v39 = vld [vmem:[%s1 + $0x18] sm:$0xff]
  %v40 = vld [vmem:[%s2] sm:$0x1]
  %v42 = vlaneseq
  %v43 = vshrl.u32 %v42, 7
  %v44 = vsub.s32 0, %v43
  %v45 = vrot.slane %v40, %v44
  %vm47 = vcmask 261120
  %v49 = vsel %vm47, %v20, 0
  %v52 = vsel %vm47, %v21, 0
  %v55 = vsel %vm47, %v22, 0
  %v58 = vsel %vm47, %v23, 0
  %v61 = vsel %vm47, %v24, 0
  %v64 = vsel %vm47, %v25, 0
  %v67 = vsel %vm47, %v26, 0
  %v70 = vsel %vm47, %v27, 0
  %v73 = vsel %vm47, %v28, 0
  %v76 = vsel %vm47, %v29, 0
  %v79 = vsel %vm47, %v30, 0
  %v82 = vsel %vm47, %v31, 0
  %v85 = vsel %vm47, %v32, 0
  %v88 = vsel %vm47, %v33, 0
  %v91 = vsel %vm47, %v34, 0
  %v94 = vsel %vm47, %v35, 0
  %96 = vmatprep.subr.mxu0 0.0
  %97 = vmatpush1.msra.mxu0 %v36
  %98 = vmatprep.subr.mxu0 0.0
  %99 = vmatpush1.msra.mxu0 %v37
  %100 = vmatprep.subr.mxu0 0.0
  %101 = vmatpush1.msra.mxu0 %v38
  %102 = vmatprep.subr.mxu0 0.0
  %103 = vmatpush1.msra.mxu0 %v39
  %104 = vmatprep.subr.mxu0 0.0
  %105 = vmatpush1.msra.mxu0 0.0
  %106 = vmatprep.subr.mxu0 0.0
  %107 = vmatpush1.msra.mxu0 0.0
  %108 = vmatprep.subr.mxu0 0.0
  %109 = vmatpush1.msra.mxu0 0.0
  %110 = vmatprep.subr.mxu0 0.0
  %111 = vmatpush1.msra.mxu0 0.0
  %112 = vmatprep.subr.mxu0 0.0
  %113 = vmatpush1.msra.mxu0 0.0
  %114 = vmatprep.subr.mxu0 0.0
  %115 = vmatpush1.msra.mxu0 0.0
  %116 = vmatprep.subr.mxu0 0.0
  %117 = vmatpush1.msra.mxu0 0.0
  %118 = vmatprep.subr.mxu0 0.0
  %119 = vmatpush1.msra.mxu0 0.0
  %120 = vmatprep.subr.mxu0 0.0
  %121 = vmatpush1.msra.mxu0 0.0
  %122 = vmatprep.subr.mxu0 0.0
  %123 = vmatpush1.msra.mxu0 0.0
  %124 = vmatprep.subr.mxu0 0.0
  %125 = vmatpush1.msra.mxu0 0.0
  %126 = vmatprep.subr.mxu0 0.0
  %127 = vmatpush1.msra.mxu0 0.0
  %128 = vmatprep.subr.mxu0 0.0
  %129 = vmatpush1.msra.mxu0 0.0
  %130 = vmatprep.subr.mxu0 0.0
  %131 = vmatpush1.msra.mxu0 0.0
  %132 = vmatprep.subr.mxu0 0.0
  %133 = vmatpush1.msra.mxu0 0.0
  %134 = vmatprep.subr.mxu0 0.0
  %135 = vmatpush1.msra.mxu0 0.0
  %136 = vmatprep.subr.mxu0 0.0
  %137 = vmatpush1.msra.mxu0 0.0
  %138 = vmatprep.subr.mxu0 0.0
  %139 = vmatpush1.msra.mxu0 0.0
  %140 = vmatprep.subr.mxu0 0.0
  %141 = vmatpush1.msra.mxu0 0.0
  %142 = vmatprep.subr.mxu0 0.0
  %143 = vmatpush1.msra.mxu0 0.0
  %144 = vmatprep.subr.mxu0 0.0
  %145 = vmatpush1.msra.mxu0 0.0
  %146 = vmatprep.subr.mxu0 0.0
  %147 = vmatpush1.msra.mxu0 0.0
  %148 = vmatprep.subr.mxu0 0.0
  %149 = vmatpush1.msra.mxu0 0.0
  %150 = vmatprep.subr.mxu0 0.0
  %151 = vmatpush1.msra.mxu0 0.0
  %152 = vmatprep.subr.mxu0 0.0
  %153 = vmatpush1.msra.mxu0 0.0
  %154 = vmatprep.subr.mxu0 0.0
  %155 = vmatpush1.msra.mxu0 0.0
  %156 = vmatprep.subr.mxu0 0.0
  %157 = vmatpush1.msra.mxu0 0.0
  %158 = vmatprep.subr.mxu0 0.0
  %159 = vmatpush1.msra.mxu0 0.0
  %160 = vmatprep.mubr.f32.mxu0 0.0
  %161 = vmatmul.mubr.f32.gmra.mrb[0].mxu0 %v49
  %v162 = vpop.f32.mrb[0].mxu0
  %v163 = vadd.f32 %v45, %v162
  %v164 = vpop.f32.mrb[0].mxu0
  %165 = vmatprep.mubr.f32.mxu0 0.0
  %166 = vmatmul.mubr.f32.gmra.mrb[0].mxu0 %v52
  %v167 = vpop.f32.mrb[0].mxu0
  %v168 = vadd.f32 %v45, %v167
  %v169 = vpop.f32.mrb[0].mxu0
  %170 = vmatprep.mubr.f32.mxu0 0.0
  %171 = vmatmul.mubr.f32.gmra.mrb[0].mxu0 %v55
  %v172 = vpop.f32.mrb[0].mxu0
  %v173 = vadd.f32 %v45, %v172
  %v174 = vpop.f32.mrb[0].mxu0
  %175 = vmatprep.mubr.f32.mxu0 0.0
  %176 = vmatmul.mubr.f32.gmra.mrb[0].mxu0 %v58
  %v177 = vpop.f32.mrb[0].mxu0
  %v178 = vadd.f32 %v45, %v177
  %v179 = vpop.f32.mrb[0].mxu0
  %180 = vmatprep.mubr.f32.mxu0 0.0
  %181 = vmatmul.mubr.f32.gmra.mrb[0].mxu0 %v61
  %v182 = vpop.f32.mrb[0].mxu0
  %v183 = vadd.f32 %v45, %v182
  %v184 = vpop.f32.mrb[0].mxu0
  %185 = vmatprep.mubr.f32.mxu0 0.0
  %186 = vmatmul.mubr.f32.gmra.mrb[0].mxu0 %v64
  %v187 = vpop.f32.mrb[0].mxu0
  %v188 = vadd.f32 %v45, %v187
  %v189 = vpop.f32.mrb[0].mxu0
  %190 = vmatprep.mubr.f32.mxu0 0.0
  %191 = vmatmul.mubr.f32.gmra.mrb[0].mxu0 %v67
  %v192 = vpop.f32.mrb[0].mxu0
  %v193 = vadd.f32 %v45, %v192
  %v194 = vpop.f32.mrb[0].mxu0
  %195 = vmatprep.mubr.f32.mxu0 0.0
  %196 = vmatmul.mubr.f32.gmra.mrb[0].mxu0 %v70
  %v197 = vpop.f32.mrb[0].mxu0
  %v198 = vadd.f32 %v45, %v197
  %v199 = vpop.f32.mrb[0].mxu0
  %200 = vmatprep.mubr.f32.mxu0 0.0
  %201 = vmatmul.mubr.f32.gmra.mrb[0].mxu0 %v73
  %v202 = vpop.f32.mrb[0].mxu0
  %v203 = vadd.f32 %v45, %v202
  %v204 = vpop.f32.mrb[0].mxu0
  %205 = vmatprep.mubr.f32.mxu0 0.0
  %206 = vmatmul.mubr.f32.gmra.mrb[0].mxu0 %v76
  %v207 = vpop.f32.mrb[0].mxu0
  %v208 = vadd.f32 %v45, %v207
  %v209 = vpop.f32.mrb[0].mxu0
  %210 = vmatprep.mubr.f32.mxu0 0.0
  %211 = vmatmul.mubr.f32.gmra.mrb[0].mxu0 %v79
  %v212 = vpop.f32.mrb[0].mxu0
  %v213 = vadd.f32 %v45, %v212
  %v214 = vpop.f32.mrb[0].mxu0
  %215 = vmatprep.mubr.f32.mxu0 0.0
  %216 = vmatmul.mubr.f32.gmra.mrb[0].mxu0 %v82
  %v217 = vpop.f32.mrb[0].mxu0
  %v218 = vadd.f32 %v45, %v217
  %v219 = vpop.f32.mrb[0].mxu0
  %220 = vmatprep.mubr.f32.mxu0 0.0
  %221 = vmatmul.mubr.f32.gmra.mrb[0].mxu0 %v85
  %v222 = vpop.f32.mrb[0].mxu0
  %v223 = vadd.f32 %v45, %v222
  %v224 = vpop.f32.mrb[0].mxu0
  %225 = vmatprep.mubr.f32.mxu0 0.0
  %226 = vmatmul.mubr.f32.gmra.mrb[0].mxu0 %v88
  %v227 = vpop.f32.mrb[0].mxu0
  %v228 = vadd.f32 %v45, %v227
  %v229 = vpop.f32.mrb[0].mxu0
  %230 = vmatprep.mubr.f32.mxu0 0.0
  %231 = vmatmul.mubr.f32.gmra.mrb[0].mxu0 %v91
  %v232 = vpop.f32.mrb[0].mxu0
  %v233 = vadd.f32 %v45, %v232
  %v234 = vpop.f32.mrb[0].mxu0
  %235 = vmatprep.mubr.f32.mxu0 0.0
  %236 = vmatmul.mubr.f32.gmra.mrb[0].mxu0 %v94
  %v237 = vpop.f32.mrb[0].mxu0
  %v238 = vadd.f32 %v45, %v237
  %v239 = vpop.f32.mrb[0].mxu0
  %240 = vdwg.mxu0
  %v241 = vmax.f32 %v163, 0.0
  %v242 = vmax.f32 %v168, 0.0
  %v243 = vmax.f32 %v173, 0.0
  %v244 = vmax.f32 %v178, 0.0
  %v245 = vmax.f32 %v183, 0.0
  %v246 = vmax.f32 %v188, 0.0
  %v247 = vmax.f32 %v193, 0.0
  %v248 = vmax.f32 %v198, 0.0
  %v249 = vmax.f32 %v203, 0.0
  %v250 = vmax.f32 %v208, 0.0
  %v251 = vmax.f32 %v213, 0.0
  %v252 = vmax.f32 %v218, 0.0
  %v253 = vmax.f32 %v223, 0.0
  %v254 = vmax.f32 %v228, 0.0
  %v255 = vmax.f32 %v233, 0.0
  %v256 = vmax.f32 %v238, 0.0
  %v257 = vld [vmem:[%s3] sm:$0xff]
  %v258 = vld [vmem:[%s3 + $0x8] sm:$0xff]
  %v259 = vld [vmem:[%s3 + $0x10] sm:$0xff]
  %v260 = vld [vmem:[%s3 + $0x18] sm:$0xff]
  %v261 = vld [vmem:[%s3 + $0x20] sm:$0xff]
  %v262 = vld [vmem:[%s3 + $0x28] sm:$0xff]
  %v263 = vld [vmem:[%s3 + $0x30] sm:$0xff]
  %v264 = vld [vmem:[%s3 + $0x38] sm:$0xff]
  %v265 = vld [vmem:[%s3 + $0x40] sm:$0xff]
  %v266 = vld [vmem:[%s3 + $0x48] sm:$0xff]
  %v267 = vld [vmem:[%s3 + $0x50] sm:$0xff]
  %v268 = vld [vmem:[%s3 + $0x58] sm:$0xff]
  %v269 = vld [vmem:[%s3 + $0x60] sm:$0xff]
  %v270 = vld [vmem:[%s3 + $0x68] sm:$0xff]
  %v271 = vld [vmem:[%s3 + $0x70] sm:$0xff]
  %v272 = vld [vmem:[%s3 + $0x78] sm:$0xff]
  %v273 = vld [vmem:[%s4] sm:$0x1]
  %v275 = vlaneseq
  %v276 = vshrl.u32 %v275, 7
  %v277 = vsub.s32 0, %v276
  %v278 = vrot.slane %v273, %v277
  %280 = vmatprep.subr.mxu0 0.0
  %281 = vmatpush1.msra.mxu0 %v257
  %282 = vmatprep.subr.mxu0 0.0
  %283 = vmatpush1.msra.mxu0 %v258
  %284 = vmatprep.subr.mxu0 0.0
  %285 = vmatpush1.msra.mxu0 %v259
  %286 = vmatprep.subr.mxu0 0.0
  %287 = vmatpush1.msra.mxu0 %v260
  %288 = vmatprep.subr.mxu0 0.0
  %289 = vmatpush1.msra.mxu0 %v261
  %290 = vmatprep.subr.mxu0 0.0
  %291 = vmatpush1.msra.mxu0 %v262
  %292 = vmatprep.subr.mxu0 0.0
  %293 = vmatpush1.msra.mxu0 %v263
  %294 = vmatprep.subr.mxu0 0.0
  %295 = vmatpush1.msra.mxu0 %v264
  %296 = vmatprep.subr.mxu0 0.0
  %297 = vmatpush1.msra.mxu0 %v265
  %298 = vmatprep.subr.mxu0 0.0
  %299 = vmatpush1.msra.mxu0 %v266
  %300 = vmatprep.subr.mxu0 0.0
  %301 = vmatpush1.msra.mxu0 %v267
  %302 = vmatprep.subr.mxu0 0.0
  %303 = vmatpush1.msra.mxu0 %v268
  %304 = vmatprep.subr.mxu0 0.0
  %305 = vmatpush1.msra.mxu0 %v269
  %306 = vmatprep.subr.mxu0 0.0
  %307 = vmatpush1.msra.mxu0 %v270
  %308 = vmatprep.subr.mxu0 0.0
  %309 = vmatpush1.msra.mxu0 %v271
  %310 = vmatprep.subr.mxu0 0.0
  %311 = vmatpush1.msra.mxu0 %v272
  %312 = vmatprep.subr.mxu0 0.0
  %313 = vmatpush1.msra.mxu0 0.0
  %314 = vmatprep.subr.mxu0 0.0
  %315 = vmatpush1.msra.mxu0 0.0
  %316 = vmatprep.subr.mxu0 0.0
  %317 = vmatpush1.msra.mxu0 0.0
  %318 = vmatprep.subr.mxu0 0.0
  %319 = vmatpush1.msra.mxu0 0.0
  %320 = vmatprep.subr.mxu0 0.0
  %321 = vmatpush1.msra.mxu0 0.0
  %322 = vmatprep.subr.mxu0 0.0
  %323 = vmatpush1.msra.mxu0 0.0
  %324 = vmatprep.subr.mxu0 0.0
  %325 = vmatpush1.msra.mxu0 0.0
  %326 = vmatprep.subr.mxu0 0.0
  %327 = vmatpush1.msra.mxu0 0.0
  %328 = vmatprep.subr.mxu0 0.0
  %329 = vmatpush1.msra.mxu0 0.0
  %330 = vmatprep.subr.mxu0 0.0
  %331 = vmatpush1.msra.mxu0 0.0
  %332 = vmatprep.subr.mxu0 0.0
  %333 = vmatpush1.msra.mxu0 0.0
  %334 = vmatprep.subr.mxu0 0.0
  %335 = vmatpush1.msra.mxu0 0.0
  %336 = vmatprep.subr.mxu0 0.0
  %337 = vmatpush1.msra.mxu0 0.0
  %338 = vmatprep.subr.mxu0 0.0
  %339 = vmatpush1.msra.mxu0 0.0
  %340 = vmatprep.subr.mxu0 0.0
  %341 = vmatpush1.msra.mxu0 0.0
  %342 = vmatprep.subr.mxu0 0.0
  %343 = vmatpush1.msra.mxu0 0.0
  %344 = vmatprep.mubr.f32.mxu0 0.0
  %345 = vmatmul.mubr.f32.gmra.mrb[0].mxu0 %v241
  %v346 = vpop.f32.mrb[0].mxu0
  %v347 = vadd.f32 %v278, %v346
  %v348 = vpop.f32.mrb[0].mxu0
  %349 = vmatprep.mubr.f32.mxu0 0.0
  %350 = vmatmul.mubr.f32.gmra.mrb[0].mxu0 %v242
  %v351 = vpop.f32.mrb[0].mxu0
  %v352 = vadd.f32 %v278, %v351
  %v353 = vpop.f32.mrb[0].mxu0
  %354 = vmatprep.mubr.f32.mxu0 0.0
  %355 = vmatmul.mubr.f32.gmra.mrb[0].mxu0 %v243
  %v356 = vpop.f32.mrb[0].mxu0
  %v357 = vadd.f32 %v278, %v356
  %v358 = vpop.f32.mrb[0].mxu0
  %359 = vmatprep.mubr.f32.mxu0 0.0
  %360 = vmatmul.mubr.f32.gmra.mrb[0].mxu0 %v244
  %v361 = vpop.f32.mrb[0].mxu0
  %v362 = vadd.f32 %v278, %v361
  %v363 = vpop.f32.mrb[0].mxu0
  %364 = vmatprep.mubr.f32.mxu0 0.0
  %365 = vmatmul.mubr.f32.gmra.mrb[0].mxu0 %v245
  %v366 = vpop.f32.mrb[0].mxu0
  %v367 = vadd.f32 %v278, %v366
  %v368 = vpop.f32.mrb[0].mxu0
  %369 = vmatprep.mubr.f32.mxu0 0.0
  %370 = vmatmul.mubr.f32.gmra.mrb[0].mxu0 %v246
  %v371 = vpop.f32.mrb[0].mxu0
  %v372 = vadd.f32 %v278, %v371
  %v373 = vpop.f32.mrb[0].mxu0
  %374 = vmatprep.mubr.f32.mxu0 0.0
  %375 = vmatmul.mubr.f32.gmra.mrb[0].mxu0 %v247
  %v376 = vpop.f32.mrb[0].mxu0
  %v377 = vadd.f32 %v278, %v376
  %v378 = vpop.f32.mrb[0].mxu0
  %379 = vmatprep.mubr.f32.mxu0 0.0
  %380 = vmatmul.mubr.f32.gmra.mrb[0].mxu0 %v248
  %v381 = vpop.f32.mrb[0].mxu0
  %v382 = vadd.f32 %v278, %v381
  %v383 = vpop.f32.mrb[0].mxu0
  %384 = vmatprep.mubr.f32.mxu0 0.0
  %385 = vmatmul.mubr.f32.gmra.mrb[0].mxu0 %v249
  %v386 = vpop.f32.mrb[0].mxu0
  %v387 = vadd.f32 %v278, %v386
  %v388 = vpop.f32.mrb[0].mxu0
  %389 = vmatprep.mubr.f32.mxu0 0.0
  %390 = vmatmul.mubr.f32.gmra.mrb[0].mxu0 %v250
  %v391 = vpop.f32.mrb[0].mxu0
  %v392 = vadd.f32 %v278, %v391
  %v393 = vpop.f32.mrb[0].mxu0
  %394 = vmatprep.mubr.f32.mxu0 0.0
  %395 = vmatmul.mubr.f32.gmra.mrb[0].mxu0 %v251
  %v396 = vpop.f32.mrb[0].mxu0
  %v397 = vadd.f32 %v278, %v396
  %v398 = vpop.f32.mrb[0].mxu0
  %399 = vmatprep.mubr.f32.mxu0 0.0
  %400 = vmatmul.mubr.f32.gmra.mrb[0].mxu0 %v252
  %v401 = vpop.f32.mrb[0].mxu0
  %v402 = vadd.f32 %v278, %v401
  %v403 = vpop.f32.mrb[0].mxu0
  %404 = vmatprep.mubr.f32.mxu0 0.0
  %405 = vmatmul.mubr.f32.gmra.mrb[0].mxu0 %v253
  %v406 = vpop.f32.mrb[0].mxu0
  %v407 = vadd.f32 %v278, %v406
  %v408 = vpop.f32.mrb[0].mxu0
  %409 = vmatprep.mubr.f32.mxu0 0.0
  %410 = vmatmul.mubr.f32.gmra.mrb[0].mxu0 %v254
  %v411 = vpop.f32.mrb[0].mxu0
  %v412 = vadd.f32 %v278, %v411
  %v413 = vpop.f32.mrb[0].mxu0
  %414 = vmatprep.mubr.f32.mxu0 0.0
  %415 = vmatmul.mubr.f32.gmra.mrb[0].mxu0 %v255
  %v416 = vpop.f32.mrb[0].mxu0
  %v417 = vadd.f32 %v278, %v416
  %v418 = vpop.f32.mrb[0].mxu0
  %419 = vmatprep.mubr.f32.mxu0 0.0
  %420 = vmatmul.mubr.f32.gmra.mrb[0].mxu0 %v256
  %v421 = vpop.f32.mrb[0].mxu0
  %v422 = vadd.f32 %v278, %v421
  %v423 = vpop.f32.mrb[0].mxu0
  %424 = vdwg.mxu0
  %vm425 = vcmask 64512
  %426 = vst.msk [vmem:[%s5] sm:$0xff] %vm425, %v347
  %427 = vst.msk [vmem:[%s5 + $0x8] sm:$0xff] %vm425, %v352
  %428 = vst.msk [vmem:[%s5 + $0x10] sm:$0xff] %vm425, %v357
  %429 = vst.msk [vmem:[%s5 + $0x18] sm:$0xff] %vm425, %v362
  %430 = vst.msk [vmem:[%s5 + $0x20] sm:$0xff] %vm425, %v367
  %431 = vst.msk [vmem:[%s5 + $0x28] sm:$0xff] %vm425, %v372
  %432 = vst.msk [vmem:[%s5 + $0x30] sm:$0xff] %vm425, %v377
  %433 = vst.msk [vmem:[%s5 + $0x38] sm:$0xff] %vm425, %v382
  %434 = vst.msk [vmem:[%s5 + $0x40] sm:$0xff] %vm425, %v387
  %435 = vst.msk [vmem:[%s5 + $0x48] sm:$0xff] %vm425, %v392
  %436 = vst.msk [vmem:[%s5 + $0x50] sm:$0xff] %vm425, %v397
  %437 = vst.msk [vmem:[%s5 + $0x58] sm:$0xff] %vm425, %v402
  %438 = vst.msk [vmem:[%s5 + $0x60] sm:$0xff] %vm425, %v407
  %439 = vst.msk [vmem:[%s5 + $0x68] sm:$0xff] %vm425, %v412
  %440 = vst.msk [vmem:[%s5 + $0x70] sm:$0xff] %vm425, %v417
  %441 = vst.msk [vmem:[%s5 + $0x78] sm:$0xff] %vm425, %v422
  // Predicated region
  $region22: #{tpu_custom_call.1} parent=0 // pred_check
    _
  $region23: #{tpu_custom_call.1} parent=0 // pred_check_branch
    %443 = sbr.rel (0) target = $region25
  $region24: #{tpu_custom_call.1} parent=0 // pred_region
    _
  $region25: #{tpu_custom_call.1} parent=0 // pred_fallthru
    _
  // Predicated region
  $region26: #{tpu_custom_call.1} parent=0 // pred_check
    _
  $region27: #{tpu_custom_call.1} parent=0 // pred_check_branch
    %445 = sbr.rel (0) target = $region29
  $region28: #{tpu_custom_call.1} parent=0 // pred_region
    _
  $region29: #{tpu_custom_call.1} parent=0 // pred_fallthru
    _

</llo_original>
